<compile_context>
chip_gen: v6e
topology: v6e:2x2x1
jax: 0.10.0
libtpu: 0.0.40
codegen_flags: <defaults>
</compile_context>

<pallas_src>
import jax
import jax.numpy as jnp
from jax.experimental import pallas as pl
from jax.experimental.pallas import tpu as pltpu


def _round_up(x, m):
    return (x + m - 1) // m * m


def avgpool_ln_fc_kernel(x_ref, w_ref, b_ref, o_ref):
    # x_ref : (BM, L, H)  BM batch rows, full sequence, full hidden
    # w_ref : (H, H)      fc_out1 weight^T with LayerNorm gamma folded in
    # b_ref : (1, H)      fc_out1 bias with LayerNorm beta folded in
    # o_ref : (BM, H)
    L = x_ref.shape[1]
    H = x_ref.shape[2]

    # AvgPool1d(kernel=map_size, stride=map_size) with L == map_size:
    # f32-accumulated sum over the sequence axis, scaled once by 1/L.
    pooled = jnp.sum(x_ref[...], axis=1, dtype=jnp.float32) * (1.0 / L)   # (BM, H)

    # LayerNorm statistics (biased variance, eps=1e-5). Affine already folded
    # into w_ref / b_ref, so only the normalization happens here.
    mu = jnp.sum(pooled, axis=-1, keepdims=True) * (1.0 / H)
    centered = pooled - mu
    var = jnp.sum(centered * centered, axis=-1, keepdims=True) * (1.0 / H)
    normed = centered * jax.lax.rsqrt(var + 1e-5)                         # (BM, H)

    # Fused Linear (+ LN affine): single (BM,H) x (H,H) GEMM, f32 accumulate.
    out = jnp.dot(normed.astype(w_ref.dtype), w_ref[...],
                  preferred_element_type=jnp.float32)
    out = out + b_ref[...].astype(jnp.float32)

    o_ref[...] = out.astype(o_ref.dtype)


def avgpooling_forward(x, w_fc, b_fc, gamma, beta, *,
                       block_rows=None, weight_dtype=None):
    """x: (B, L, H) with L == map_size. Returns (B, H).

    weight_dtype: optionally cast the fused weight once in the wrapper
    (e.g. jnp.bfloat16 for MXU-native feeding); None keeps w_fc's dtype.
    """
    B, L, H = x.shape

    # Fold LayerNorm affine into the linear (one-time precompute outside kernel):
    #   W' = diag(gamma) @ W^T   (H_in x H_out),   b' = beta @ W^T + b
    w_t32 = w_fc.T.astype(jnp.float32)
    wt = gamma.astype(jnp.float32)[:, None] * w_t32                       # (H, H)
    b_fused = (beta.astype(jnp.float32) @ w_t32
               + b_fc.astype(jnp.float32)).reshape(1, H)                  # (1, H)
    wt = wt.astype(weight_dtype if weight_dtype is not None else w_fc.dtype)

    # Batch-row tile: multiple of 8 (sublane-dense), capped at 256 per step.
    if block_rows is None:
        block_rows = min(256, _round_up(B, 8))
    BM = _round_up(block_rows, 8)
    B_pad = _round_up(B, BM)
    if B_pad != B:
        # Zero padding is safe: pooled=0 -> var=0 -> rsqrt(eps), rows discarded.
        x = jnp.pad(x, ((0, B_pad - B), (0, 0), (0, 0)))

    # Explicit VMEM budget: double-buffered x tiles + resident weight/bias +
    # double-buffered output tiles + headroom.
    vmem_bytes = (2 * BM * L * H * x.dtype.itemsize
                  + 2 * H * H * wt.dtype.itemsize
                  + 2 * H * 4
                  + 2 * BM * H * x.dtype.itemsize
                  + (4 << 20))
    vmem_bytes = int(min(max(vmem_bytes, 8 << 20), 64 << 20))

    out = pl.pallas_call(
        avgpool_ln_fc_kernel,
        out_shape=jax.ShapeDtypeStruct((B_pad, H), x.dtype),
        grid_spec=pltpu.PrefetchScalarGridSpec(
            num_scalar_prefetch=0,
            grid=(B_pad // BM,),
            in_specs=[
                pl.BlockSpec((BM, L, H), lambda g: (g, 0, 0)),
                # Constant index_map -> weight/bias blocks reused across steps.
                # For very large H on v7x (64 MiB VMEM): pass
                # weight_dtype=jnp.bfloat16 and add an output-N grid axis.
                pl.BlockSpec((H, H), lambda g: (0, 0)),
                pl.BlockSpec((1, H), lambda g: (0, 0)),
            ],
            out_specs=pl.BlockSpec((BM, H), lambda g: (g, 0)),
        ),
        compiler_params=pltpu.CompilerParams(
            dimension_semantics=("parallel",),
            vmem_limit_bytes=vmem_bytes),
    )(x, wt, b_fused)

    return out[:B]


def _reference(x, w_fc, b_fc, gamma, beta):
    pooled = jnp.mean(x, axis=1)
    mu = jnp.mean(pooled, axis=-1, keepdims=True)
    var = jnp.mean((pooled - mu) ** 2, axis=-1, keepdims=True)
    normed = (pooled - mu) / jnp.sqrt(var + 1e-5) * gamma + beta
    return normed @ w_fc.T + b_fc


if __name__ == "__main__":
    B, map_size, hidden = 2, 8, 32   # L == map_size so pooled seq len == 1
    key = jax.random.PRNGKey(0)
    k1, k2, k3 = jax.random.split(key, 3)

    x = jax.random.normal(k1, (B, map_size, hidden), dtype=jnp.float32)

    # Deterministic parameter init (synthetic, not a checkpoint).
    w_fc = jax.random.normal(k2, (hidden, hidden), dtype=jnp.float32) * 0.05
    b_fc = jax.random.normal(k3, (hidden,), dtype=jnp.float32) * 0.01
    gamma = jnp.ones((hidden,), dtype=jnp.float32)
    beta = jnp.zeros((hidden,), dtype=jnp.float32)

    # f32 weight path here for a tight correctness check; pass
    # weight_dtype=jnp.bfloat16 for the MXU-native path (loosen tolerance then).
    out = avgpooling_forward(x, w_fc, b_fc, gamma, beta)
    out = jax.block_until_ready(out)

    ref = _reference(x, w_fc, b_fc, gamma, beta)
    assert out.shape == (B, hidden)
    assert jnp.allclose(out, ref, atol=1e-5, rtol=1e-5), "mismatch vs reference"

    print("KERNEL_OK")
</pallas_src>

<mosaic_0001>
module attributes {stable_mosaic.version = 11 : i64} {
  func.func @avgpool_ln_fc_kernel(%arg0: i32, %arg1: memref<8x8x32xf32, #tpu.memory_space<vmem>>, %arg2: memref<32x32xf32, #tpu.memory_space<vmem>>, %arg3: memref<1x32xf32, #tpu.memory_space<vmem>>, %arg4: memref<8x32xf32, #tpu.memory_space<vmem>>) attributes {dimension_semantics = [#tpu.dimension_semantics<parallel>], iteration_bounds = array<i64: 1>, scalar_prefetch = 0 : i64, scratch_operands = 0 : i64, tpu.core_type = #tpu.core_type<tc>, window_params = [{transform_indices = @transform_0, window_bounds = array<i64: 8, 8, 32>}, {pipeline_mode = #tpu.pipeline_mode<synchronous>, transform_indices = @transform_1, window_bounds = array<i64: 32, 32>}, {pipeline_mode = #tpu.pipeline_mode<synchronous>, transform_indices = @transform_2, window_bounds = array<i64: 1, 32>}, {transform_indices = @transform_3, window_bounds = array<i64: 8, 32>}]} {
    %c0 = arith.constant 0 : index
    %c0_0 = arith.constant 0 : index
    %c0_1 = arith.constant 0 : index
    %0 = vector.load %arg1[%c0, %c0_0, %c0_1] : memref<8x8x32xf32, #tpu.memory_space<vmem>>, vector<8x8x32xf32>
    %cst = arith.constant dense<0.000000e+00> : vector<8x32xf32>
    %1 = vector.multi_reduction <add>, %0, %cst [1] : vector<8x8x32xf32> to vector<8x32xf32>
    %cst_2 = arith.constant 1.250000e-01 : f32
    %2 = vector.broadcast %cst_2 : f32 to vector<8x32xf32>
    %3 = arith.mulf %1, %2 : vector<8x32xf32>
    %cst_3 = arith.constant dense<0.000000e+00> : vector<8xf32>
    %4 = vector.multi_reduction <add>, %3, %cst_3 [1] : vector<8x32xf32> to vector<8xf32>
    %5 = vector.shape_cast %4 : vector<8xf32> to vector<8x1xf32>
    %cst_4 = arith.constant 3.125000e-02 : f32
    %6 = vector.broadcast %cst_4 : f32 to vector<8x1xf32>
    %7 = arith.mulf %5, %6 : vector<8x1xf32>
    %8 = vector.broadcast %7 : vector<8x1xf32> to vector<8x32xf32>
    %9 = arith.subf %3, %8 : vector<8x32xf32>
    %10 = arith.mulf %9, %9 : vector<8x32xf32>
    %cst_5 = arith.constant dense<0.000000e+00> : vector<8xf32>
    %11 = vector.multi_reduction <add>, %10, %cst_5 [1] : vector<8x32xf32> to vector<8xf32>
    %12 = vector.shape_cast %11 : vector<8xf32> to vector<8x1xf32>
    %cst_6 = arith.constant 3.125000e-02 : f32
    %13 = vector.broadcast %cst_6 : f32 to vector<8x1xf32>
    %14 = arith.mulf %12, %13 : vector<8x1xf32>
    %cst_7 = arith.constant 9.99999974E-6 : f32
    %15 = vector.broadcast %cst_7 : f32 to vector<8x1xf32>
    %16 = arith.addf %14, %15 : vector<8x1xf32>
    %17 = math.rsqrt %16 : vector<8x1xf32>
    %18 = vector.broadcast %17 : vector<8x1xf32> to vector<8x32xf32>
    %19 = arith.mulf %9, %18 : vector<8x32xf32>
    %c0_8 = arith.constant 0 : index
    %c0_9 = arith.constant 0 : index
    %20 = vector.load %arg2[%c0_8, %c0_9] : memref<32x32xf32, #tpu.memory_space<vmem>>, vector<32x32xf32>
    %cst_10 = arith.constant dense<0.000000e+00> : vector<8x32xf32>
    %21 = tpu.matmul %19, %20, %cst_10 {dimension_numbers = #tpu.dot_dimension_numbers<[1], [0], [0], [1], [0, 0, 1, 1], [], []>} : vector<8x32xf32>, vector<32x32xf32>, vector<8x32xf32> -> vector<8x32xf32>
    %c0_11 = arith.constant 0 : index
    %c0_12 = arith.constant 0 : index
    %22 = vector.load %arg3[%c0_11, %c0_12] : memref<1x32xf32, #tpu.memory_space<vmem>>, vector<1x32xf32>
    %23 = vector.broadcast %22 : vector<1x32xf32> to vector<8x32xf32>
    %24 = arith.addf %21, %23 : vector<8x32xf32>
    %c0_13 = arith.constant 0 : index
    %c0_14 = arith.constant 0 : index
    %25 = vector.load %arg4[%c0_13, %c0_14] : memref<8x32xf32, #tpu.memory_space<vmem>>, vector<8x32xf32>
    tpu.vector_store %arg4[%c0_13, %c0_14], %24 {strides = array<i32>} : memref<8x32xf32, #tpu.memory_space<vmem>>, vector<8x32xf32>,
    return
  }
  func.func @transform_0(%arg0: i32) -> (i32, i32, i32) {
    %c0_i32 = arith.constant 0 : i32
    %c0_i32_0 = arith.constant 0 : i32
    %c0_i32_1 = arith.constant 0 : i32
    return %arg0, %c0_i32, %c0_i32_0 : i32, i32, i32
  }
  func.func @transform_1(%arg0: i32) -> (i32, i32) {
    %c0_i32 = arith.constant 0 : i32
    %c0_i32_0 = arith.constant 0 : i32
    %c0_i32_1 = arith.constant 0 : i32
    return %c0_i32, %c0_i32_0 : i32, i32
  }
  func.func @transform_2(%arg0: i32) -> (i32, i32) {
    %c0_i32 = arith.constant 0 : i32
    %c0_i32_0 = arith.constant 0 : i32
    %c0_i32_1 = arith.constant 0 : i32
    return %c0_i32, %c0_i32_0 : i32, i32
  }
  func.func @transform_3(%arg0: i32) -> (i32, i32) {
    %c0_i32 = arith.constant 0 : i32
    %c0_i32_0 = arith.constant 0 : i32
    return %arg0, %c0_i32 : i32, i32
  }
}

</mosaic_0001>

<llo_original>
// kernel: tpu_custom_call.1
$region0: #{tpu_custom_call.1}
  #allocation0 [shape = 'u32[]', space=smem, size = 0x4, offset = 0x4, fixed_abs, tag = 'smem constant byte address 0x4 - core index']
  #allocation1 [shape = 'u32[144,128]{1,0:T(1,128)}', space=vmem, size = 0x12000, scoped, tag = 'internal scratch']
  %s0 = inlined_call_operand.hbm [shape: f32[8,8,32], index: 0, kind: input, shape index: {}]
  %s1 = inlined_call_operand.hbm [shape: f32[32,32], index: 1, kind: input, shape index: {}]
  %s2 = inlined_call_operand.vmem [shape: f32[1,32], index: 2, kind: input, shape index: {}]
  %s3 = inlined_call_operand.hbm [shape: f32[8,32], index: 3, kind: output, shape index: {}]
  %s4 = sld [smem:[#allocation0]]
  $region30: #{tpu_custom_call.1} parent=0
    _
  %s6 = ssub.s32 1, %s4
  %s7 = scalar_select 0, %s6, %s4
  $region1: #{tpu_custom_call.1} parent=0
    #allocation2 [shape = 'u8[32768]{0}', space=vmem, size = 0x8000, scoped, tag = 'input window, operand 0, single buffered']
    #allocation3 [shape = 's32[1]{0}', space=sflag, size = 0x4, scoped, tag = 'scoped memory for tpu_custom_call.1']
    #allocation4 [shape = 's32[1]{0}', space=sflag, size = 0x4, scoped, tag = 'scoped memory for tpu_custom_call.1']
    #allocation5 [shape = 'u8[16384]{0}', space=vmem, size = 0x4000, scoped, tag = 'input window, operand 1, single buffered']
    #allocation6 [shape = 's32[1]{0}', space=sflag, size = 0x4, scoped, tag = 'scoped memory for tpu_custom_call.1']
    #allocation7 [shape = 'u8[4096]{0}', space=vmem, size = 0x1000, scoped, tag = 'output window, operand 0, single buffered']
    %8 = vsyncpa [#allocation3], 0
    %9 = vsyncpa [#allocation6], 0
    %10 = vsyncpa [#allocation4], 0
    // Predicated region
    $region2: #{tpu_custom_call.1} parent=1 // pred_check
      _
    $region3: #{tpu_custom_call.1} parent=1 // pred_check_branch
      %12 = sbr.rel (0) target = $region5
    $region4: #{tpu_custom_call.1} parent=1 // pred_region
      %s14 = ssub.s32 1024, 1024
      %15 = vsyncadd [#allocation3], %s14
      %s16 = sshll.u32 [#allocation2], 4
      %s17 = int_to_ptr.vmem [resolvable:$true] %s16
      %22 = dma.hbm_to_vmem [thread:$0]  %s0, 1024, %s17, [#allocation3], 128, 128, 8
    $region5: #{tpu_custom_call.1} parent=1 // pred_fallthru
      _
    // Predicated region
    $region6: #{tpu_custom_call.1} parent=1 // pred_check
      _
    $region7: #{tpu_custom_call.1} parent=1 // pred_check_branch
      %24 = sbr.rel (0) target = $region9
    $region8: #{tpu_custom_call.1} parent=1 // pred_region
      %s26 = ssub.s32 512, 512
      %27 = vsyncadd [#allocation6], %s26
      %s28 = sshll.u32 [#allocation5], 4
      %s29 = int_to_ptr.vmem [resolvable:$true] %s28
      %34 = dma.hbm_to_vmem [thread:$0]  %s1, 512, %s29, [#allocation6], 128, 128, 8
    $region9: #{tpu_custom_call.1} parent=1 // pred_fallthru
      _
    // Predicated region
    $region10: #{tpu_custom_call.1} parent=1 // pred_check
      _
    $region11: #{tpu_custom_call.1} parent=1 // pred_check_branch
      %36 = sbr.rel (0) target = $region13
    $region12: #{tpu_custom_call.1} parent=1 // pred_region
      _
    $region13: #{tpu_custom_call.1} parent=1 // pred_fallthru
      _
    // Predicated region
    $region14: #{tpu_custom_call.1} parent=1 // pred_check
      _
    $region15: #{tpu_custom_call.1} parent=1 // pred_check_branch
      %38 = sbr.rel (0) target = $region17
    $region16: #{tpu_custom_call.1} parent=1 // pred_region
      %39 = dma.done [#allocation3], 1024
    $region17: #{tpu_custom_call.1} parent=1 // pred_fallthru
      _
    // Predicated region
    $region18: #{tpu_custom_call.1} parent=1 // pred_check
      _
    $region19: #{tpu_custom_call.1} parent=1 // pred_check_branch
      %41 = sbr.rel (0) target = $region21
    $region20: #{tpu_custom_call.1} parent=1 // pred_region
      %42 = dma.done [#allocation6], 512
    $region21: #{tpu_custom_call.1} parent=1 // pred_fallthru
      _
    %v43 = vld [vmem:[#allocation2] sm:$0xff]
    %v44 = vld [vmem:[#allocation2 + $0x8] sm:$0xff]
    %v45 = vld [vmem:[#allocation2 + $0x10] sm:$0xff]
    %v46 = vld [vmem:[#allocation2 + $0x18] sm:$0xff]
    %v47 = vld [vmem:[#allocation2 + $0x20] sm:$0xff]
    %v48 = vld [vmem:[#allocation2 + $0x28] sm:$0xff]
    %v49 = vld [vmem:[#allocation2 + $0x30] sm:$0xff]
    %v50 = vld [vmem:[#allocation2 + $0x38] sm:$0xff]
    %vm51 = vcmask 261120
    %v52 = vsel %vm51, %v43, 0.0
    %v53 = vrot.slane %v52, 4
    %v54 = vadd.f32 %v52, %v53
    %v55 = vrot.slane %v54, 2
    %v56 = vadd.f32 %v54, %v55
    %v57 = vrot.slane %v56, 1
    %v58 = vadd.f32 %v56, %v57
    %v59 = vsel %vm51, %v44, 0.0
    %v60 = vrot.slane %v59, 4
    %v61 = vadd.f32 %v59, %v60
    %v62 = vrot.slane %v61, 2
    %v63 = vadd.f32 %v61, %v62
    %v64 = vrot.slane %v63, 1
    %v65 = vadd.f32 %v63, %v64
    %v66 = vsel %vm51, %v45, 0.0
    %v67 = vrot.slane %v66, 4
    %v68 = vadd.f32 %v66, %v67
    %v69 = vrot.slane %v68, 2
    %v70 = vadd.f32 %v68, %v69
    %v71 = vrot.slane %v70, 1
    %v72 = vadd.f32 %v70, %v71
    %v73 = vsel %vm51, %v46, 0.0
    %v74 = vrot.slane %v73, 4
    %v75 = vadd.f32 %v73, %v74
    %v76 = vrot.slane %v75, 2
    %v77 = vadd.f32 %v75, %v76
    %v78 = vrot.slane %v77, 1
    %v79 = vadd.f32 %v77, %v78
    %v80 = vsel %vm51, %v47, 0.0
    %v81 = vrot.slane %v80, 4
    %v82 = vadd.f32 %v80, %v81
    %v83 = vrot.slane %v82, 2
    %v84 = vadd.f32 %v82, %v83
    %v85 = vrot.slane %v84, 1
    %v86 = vadd.f32 %v84, %v85
    %v87 = vsel %vm51, %v48, 0.0
    %v88 = vrot.slane %v87, 4
    %v89 = vadd.f32 %v87, %v88
    %v90 = vrot.slane %v89, 2
    %v91 = vadd.f32 %v89, %v90
    %v92 = vrot.slane %v91, 1
    %v93 = vadd.f32 %v91, %v92
    %v94 = vsel %vm51, %v49, 0.0
    %v95 = vrot.slane %v94, 4
    %v96 = vadd.f32 %v94, %v95
    %v97 = vrot.slane %v96, 2
    %v98 = vadd.f32 %v96, %v97
    %v99 = vrot.slane %v98, 1
    %v100 = vadd.f32 %v98, %v99
    %v101 = vsel %vm51, %v50, 0.0
    %v102 = vrot.slane %v101, 4
    %v103 = vadd.f32 %v101, %v102
    %v104 = vrot.slane %v103, 2
    %v105 = vadd.f32 %v103, %v104
    %v106 = vrot.slane %v105, 1
    %v107 = vadd.f32 %v105, %v106
    %v108 = vmul.f32 %v58, 0.125
    %v109 = vmul.f32 %v65, 0.125
    %v110 = vmul.f32 %v72, 0.125
    %v111 = vmul.f32 %v79, 0.125
    %v112 = vmul.f32 %v86, 0.125
    %v113 = vmul.f32 %v93, 0.125
    %v114 = vmul.f32 %v100, 0.125
    %v115 = vmul.f32 %v107, 0.125
    %vm124 = vcmask 1041409
    %v125 = vsel %vm124, %v109, %v108
    %vm126 = vcmask 1042434
    %v127 = vsel %vm126, %v110, %v125
    %vm128 = vcmask 1043459
    %v129 = vsel %vm128, %v111, %v127
    %vm130 = vcmask 1044484
    %v131 = vsel %vm130, %v112, %v129
    %vm132 = vcmask 1045509
    %v133 = vsel %vm132, %v113, %v131
    %vm134 = vcmask 1046534
    %v135 = vsel %vm134, %v114, %v133
    %vm136 = vcmask 1047559
    %v137 = vsel %vm136, %v115, %v135
    %v139 = vsel %vm51, %v137, 0.0
    %140 = vadd.xlane.f32.xlu0 %v139
    %v141 = vpop.xlane.xlu0 %140
    %v142 = vmul.f32 %v141, 0.03125
    %v144 = vrot.slane %v142, 1
    %v145 = vrot.slane %v142, 2
    %v146 = vrot.slane %v142, 3
    %v147 = vrot.slane %v142, 4
    %v148 = vrot.slane %v142, 5
    %v149 = vrot.slane %v142, 6
    %v150 = vrot.slane %v142, 7
    %v159 = vsub.f32 %v108, %v142
    %v160 = vsub.f32 %v109, %v144
    %v161 = vsub.f32 %v110, %v145
    %v162 = vsub.f32 %v111, %v146
    %v163 = vsub.f32 %v112, %v147
    %v164 = vsub.f32 %v113, %v148
    %v165 = vsub.f32 %v114, %v149
    %v166 = vsub.f32 %v115, %v150
    %v167 = vmul.f32 %v159, %v159
    %v168 = vmul.f32 %v160, %v160
    %v169 = vmul.f32 %v161, %v161
    %v170 = vmul.f32 %v162, %v162
    %v171 = vmul.f32 %v163, %v163
    %v172 = vmul.f32 %v164, %v164
    %v173 = vmul.f32 %v165, %v165
    %v174 = vmul.f32 %v166, %v166
    %v183 = vrot.slane %v168, 7
    %v184 = vsel %vm124, %v183, %v167
    %v185 = vrot.slane %v169, 6
    %v186 = vsel %vm126, %v185, %v184
    %v187 = vrot.slane %v170, 5
    %v188 = vsel %vm128, %v187, %v186
    %v189 = vrot.slane %v171, 4
    %v190 = vsel %vm130, %v189, %v188
    %v191 = vrot.slane %v172, 3
    %v192 = vsel %vm132, %v191, %v190
    %v193 = vrot.slane %v173, 2
    %v194 = vsel %vm134, %v193, %v192
    %v195 = vrot.slane %v174, 1
    %v196 = vsel %vm136, %v195, %v194
    %v198 = vsel %vm51, %v196, 0.0
    %199 = vadd.xlane.f32.xlu0 %v198
    %v200 = vpop.xlane.xlu0 %199
    %v201 = vmul.f32 %v200, 0.03125
    %v202 = vadd.f32 %v201, 1e-05
    %v203 = vrsqrt.pop %v202
    %v205 = vrot.slane %v203, 1
    %v206 = vrot.slane %v203, 2
    %v207 = vrot.slane %v203, 3
    %v208 = vrot.slane %v203, 4
    %v209 = vrot.slane %v203, 5
    %v210 = vrot.slane %v203, 6
    %v211 = vrot.slane %v203, 7
    %v220 = vmul.f32 %v159, %v203
    %v221 = vmul.f32 %v160, %v205
    %v222 = vmul.f32 %v161, %v206
    %v223 = vmul.f32 %v162, %v207
    %v224 = vmul.f32 %v163, %v208
    %v225 = vmul.f32 %v164, %v209
    %v226 = vmul.f32 %v165, %v210
    %v227 = vmul.f32 %v166, %v211
    %v228 = vld [vmem:[#allocation5] sm:$0xff]
    %v229 = vld [vmem:[#allocation5 + $0x8] sm:$0xff]
    %v230 = vld [vmem:[#allocation5 + $0x10] sm:$0xff]
    %v231 = vld [vmem:[#allocation5 + $0x18] sm:$0xff]
    %v232 = vld [vmem:[%s2] sm:$0x1]
    %v234 = vlaneseq
    %v235 = vshrl.u32 %v234, 7
    %v236 = vsub.s32 0, %v235
    %v237 = vrot.slane %v232, %v236
    %v247 = vrot.slane %v221, 7
    %v248 = vsel %vm124, %v247, %v220
    %v249 = vrot.slane %v222, 6
    %v250 = vsel %vm126, %v249, %v248
    %v251 = vrot.slane %v223, 5
    %v252 = vsel %vm128, %v251, %v250
    %v253 = vrot.slane %v224, 4
    %v254 = vsel %vm130, %v253, %v252
    %v255 = vrot.slane %v225, 3
    %v256 = vsel %vm132, %v255, %v254
    %v257 = vrot.slane %v226, 2
    %v258 = vsel %vm134, %v257, %v256
    %v259 = vrot.slane %v227, 1
    %v260 = vsel %vm136, %v259, %v258
    %v261 = vsel %vm51, %v260, 0
    %263 = vmatprep.subr.mxu0 0.0
    %264 = vmatpush1.msra.mxu0 0.0
    %265 = vmatprep.subr.mxu0 0.0
    %266 = vmatpush1.msra.mxu0 0.0
    %267 = vmatprep.subr.mxu0 0.0
    %268 = vmatpush1.msra.mxu0 0.0
    %269 = vmatprep.subr.mxu0 0.0
    %270 = vmatpush1.msra.mxu0 0.0
    %271 = vmatprep.subr.mxu0 0.0
    %272 = vmatpush1.msra.mxu0 0.0
    %273 = vmatprep.subr.mxu0 0.0
    %274 = vmatpush1.msra.mxu0 0.0
    %275 = vmatprep.subr.mxu0 0.0
    %276 = vmatpush1.msra.mxu0 0.0
    %277 = vmatprep.subr.mxu0 0.0
    %278 = vmatpush1.msra.mxu0 0.0
    %279 = vmatprep.subr.mxu0 0.0
    %280 = vmatpush1.msra.mxu0 0.0
    %281 = vmatprep.subr.mxu0 0.0
    %282 = vmatpush1.msra.mxu0 0.0
    %283 = vmatprep.subr.mxu0 0.0
    %284 = vmatpush1.msra.mxu0 0.0
    %285 = vmatprep.subr.mxu0 0.0
    %286 = vmatpush1.msra.mxu0 0.0
    %287 = vmatprep.subr.mxu0 0.0
    %288 = vmatpush1.msra.mxu0 %v231
    %289 = vmatprep.subr.mxu0 0.0
    %290 = vmatpush1.msra.mxu0 %v230
    %291 = vmatprep.subr.mxu0 0.0
    %292 = vmatpush1.msra.mxu0 %v229
    %293 = vmatprep.subr.mxu0 0.0
    %294 = vmatpush1.msra.mxu0 %v228
    %295 = vmatprep.subr.mxu0 0.0
    %296 = vmatpush2.msra.mxu0 0.0
    %297 = vmatprep.subr.mxu0 0.0
    %298 = vmatpush2.msra.mxu0 0.0
    %299 = vmatprep.subr.mxu0 0.0
    %300 = vmatpush2.msra.mxu0 0.0
    %301 = vmatprep.subr.mxu0 0.0
    %302 = vmatpush2.msra.mxu0 0.0
    %303 = vmatprep.subr.mxu0 0.0
    %304 = vmatpush2.msra.mxu0 0.0
    %305 = vmatprep.subr.mxu0 0.0
    %306 = vmatpush2.msra.mxu0 0.0
    %307 = vmatprep.subr.mxu0 0.0
    %308 = vmatpush2.msra.mxu0 0.0
    %309 = vmatprep.subr.mxu0 0.0
    %310 = vmatpush2.msra.mxu0 0.0
    %311 = vmatprep.subr.mxu0 0.0
    %312 = vmatpush2.msra.mxu0 0.0
    %313 = vmatprep.subr.mxu0 0.0
    %314 = vmatpush2.msra.mxu0 0.0
    %315 = vmatprep.subr.mxu0 0.0
    %316 = vmatpush2.msra.mxu0 0.0
    %317 = vmatprep.subr.mxu0 0.0
    %318 = vmatpush2.msra.mxu0 0.0
    %319 = vmatprep.subr.mxu0 0.0
    %320 = vmatpush2.msra.mxu0 0.0
    %321 = vmatprep.subr.mxu0 0.0
    %322 = vmatpush2.msra.mxu0 0.0
    %323 = vmatprep.subr.mxu0 0.0
    %324 = vmatpush2.msra.mxu0 0.0
    %325 = vmatprep.subr.mxu0 0.0
    %326 = vmatpush2.msra.mxu0 0.0
    %327 = vmatprep.mubr.f32.mxu0 0.0
    %328 = vmatmul.mubr.f32.gmra.mxu0 %v261
    %v329 = vpop.f32.mrf.mxu0
    %v330 = vadd.f32 %v237, %v329
    %v331 = vpop.f32.mrf.mxu0
    %332 = vdwg.mxu0
    %333 = vst.msk [vmem:[#allocation7] sm:$0xff] %vm51, %v330
    // Predicated region
    $region22: #{tpu_custom_call.1} parent=1 // pred_check
      _
    $region23: #{tpu_custom_call.1} parent=1 // pred_check_branch
      %335 = sbr.rel (0) target = $region25
    $region24: #{tpu_custom_call.1} parent=1 // pred_region
      %s337 = ssub.s32 128, 128
      %338 = vsyncadd [#allocation4], %s337
      %s340 = sshll.u32 [#allocation7], 4
      %s341 = int_to_ptr.vmem [resolvable:$true] %s340
      %343 = dma.vmem_to_hbm [thread:$0]  %s341, 128, %s3, [#allocation4]
    $region25: #{tpu_custom_call.1} parent=1 // pred_fallthru
      _
    // Predicated region
    $region26: #{tpu_custom_call.1} parent=1 // pred_check
      _
    $region27: #{tpu_custom_call.1} parent=1 // pred_check_branch
      %345 = sbr.rel (0) target = $region29
    $region28: #{tpu_custom_call.1} parent=1 // pred_region
      %346 = dma.done [#allocation4], 128
    $region29: #{tpu_custom_call.1} parent=1 // pred_fallthru
      _
    %347 = vsyncpa [#allocation3], 1
    %348 = vsyncpa [#allocation6], 1
    %349 = vsyncpa [#allocation4], 1

</llo_original>
